<compile_context>
chip_gen: v7x
topology: tpu7x:2x2x1
jax: 0.10.0
libtpu: 0.0.40
codegen_flags: <defaults>
</compile_context>

<pallas_src>
import functools

import jax
import jax.numpy as jnp
from jax.experimental import pallas as pl
from jax.experimental.pallas import tpu as pltpu

# ----------------------------- config (toy BERT) -----------------------------
VOCAB_SIZE = 128
TYPE_VOCAB_SIZE = 2
MAX_POSITION_EMBEDDINGS = 64
EMBEDDING_WIDTH = 32
HIDDEN_WIDTH = 64            # != EMBEDDING_WIDTH -> projection Linear is present
LAYER_NORM_EPS = 1e-12
BATCH = 2
SEQ = 8

LANE = 128


def _round_up(x, m):
    return (x + m - 1) // m * m


def _choose_batch_tile(B, S):
    """Sequences per grid step.

    Fold batch into the matmul M dimension (target ~256 rows/step at real scale),
    but keep >= 2 grid steps when possible so both v7x TensorCores get work.
    """
    bt = max(1, min(B, max(1, 256 // max(S, 1))))
    if B >= 2:
        bt = min(bt, max(1, B // 2))
    while B % bt:          # must divide the batch
        bt -= 1
    return bt


def bert_embeddings_kernel(ids_ref,     # SMEM (B*S,) int32      [scalar prefetch]
                           tt_ref,      # VMEM (ROWS, 1) int32
                           word_ref,    # VMEM (V, E_PAD) f32    (whole table resident)
                           type_ref,    # VMEM (T, E_PAD) f32
                           pos_ref,     # VMEM (ROWS, E_PAD) f32 (arange positions, pre-tiled)
                           w_ref,       # VMEM (E_PAD, H_PAD) bf16 (LN gamma folded in)
                           b_ref,       # VMEM (1, H_PAD) f32      (LN beta folded in)
                           out_ref,     # VMEM (ROWS, H_PAD) f32
                           gath_ref,    # scratch VMEM (ROWS, E_PAD) f32
                           *, e_true, eps):
    rows = out_ref.shape[0]
    base = pl.program_id(0) * rows

    # --- word embeddings: per-row dynamic-slice lookup in the VMEM-resident table ---
    # Toy vocab: 128 x 128 f32 = 64 KiB, so the whole table lives in VMEM and each row
    # read is a cheap sublane slice -- no per-token HBM DMA, no semaphore waits.
    # TODO(synk): for vocabularies that do not fit VMEM, keep the table in HBM
    # (memory_space=pl.ANY) and gather with a bounded pl.loop DMA ring (4-8 in flight).
    for j in range(rows):
        tok = ids_ref[base + j]
        gath_ref[pl.ds(j, 1), :] = word_ref[pl.ds(tok, 1), :]
    emb = gath_ref[...]                                     # (ROWS, E_PAD)

    # --- token-type embeddings: single VPU select for the common T == 2 case ---
    tt = tt_ref[...]                                        # (ROWS, 1) int32
    n_types = type_ref.shape[0]
    if n_types == 2:
        emb = emb + jnp.where(tt == 0, type_ref[0:1, :], type_ref[1:2, :])
    else:
        for t in range(n_types):
            emb = jnp.where(tt == t, emb + type_ref[t:t + 1, :], emb)

    # --- position embeddings: position_ids == arange(S); wrapper pre-tiled the rows ---
    emb = emb + pos_ref[...]

    # --- LayerNorm over the true embedding width (kept in f32) ---
    # Padding lanes (>= e_true) are exact zeros, so full-lane sums equal sums over the
    # true width.  Variance via E[x^2] - mean^2 is clamped at 0 (f32 cancellation).
    inv_e = 1.0 / e_true
    mean = jnp.sum(emb, axis=-1, keepdims=True) * inv_e
    ex2 = jnp.sum(emb * emb, axis=-1, keepdims=True) * inv_e
    var = jnp.maximum(ex2 - mean * mean, 0.0)
    normed = (emb - mean) * jax.lax.rsqrt(var + eps)
    # gamma/beta live inside w_ref/b_ref; padded lanes of `normed` hit all-zero rows
    # of w_ref, so they contribute nothing to the projection.

    # --- dropout: eval/inference mode -> identity ---
    # TODO(synk): training-mode dropout (pltpu.prng_* masking) not implemented.

    # --- fused (LayerNorm affine + projection) matmul: bf16 on the MXU, f32 accumulate ---
    out_ref[...] = (jnp.dot(normed.astype(jnp.bfloat16), w_ref[...],
                            preferred_element_type=jnp.float32)
                    + b_ref[...])


def bert_embeddings(input_ids, token_type_ids, params):
    B, S = input_ids.shape
    V, E = params["word_emb"].shape
    T = params["type_emb"].shape[0]
    P = params["pos_emb"].shape[0]
    H = params["proj_w"].shape[1]
    assert S <= P, "sequence length exceeds max_position_embeddings"

    E_PAD = _round_up(E, LANE)
    H_PAD = _round_up(H, LANE)

    BT = _choose_batch_tile(B, S)          # sequences per grid step
    ROWS = BT * S                          # rows per grid step (matmul M)
    N = B * S
    assert N % ROWS == 0
    assert ROWS % 8 == 0 or ROWS == N, "row tile must satisfy the (8,128) sublane rule"

    def pad_to(x, rows, cols):
        return jnp.pad(x, ((0, rows - x.shape[0]), (0, cols - x.shape[1])))

    # Lane-pad tables to a 128-wide embedding axis (zeros -> LN stats stay exact).
    word = pad_to(params["word_emb"], V, E_PAD)
    typ = pad_to(params["type_emb"], T, E_PAD)
    # position_ids == arange(S); pre-tile the S position rows across the BT sequences
    # of a row tile so the kernel does a single broadcast-free add.
    pos_block = jnp.tile(pad_to(params["pos_emb"][:S], S, E_PAD), (BT, 1))

    # Fold LayerNorm affine into the projection:
    #   (normed*gamma + beta) @ W + b == normed @ (gamma[:,None]*W) + (beta@W + b)
    gamma = params["ln_gamma"].reshape(E)
    beta = params["ln_beta"].reshape(E)
    w_fused = pad_to(gamma[:, None] * params["proj_w"], E_PAD, H_PAD).astype(jnp.bfloat16)
    b_fused = pad_to((beta @ params["proj_w"] + params["proj_b"].reshape(H))[None, :],
                     1, H_PAD)

    # Clamp ids so a bad id cannot make the in-kernel row read go out of bounds
    # (PyTorch would raise on out-of-range ids; such inputs are considered invalid).
    ids = jnp.clip(input_ids.astype(jnp.int32), 0, V - 1).reshape(N)
    tt = token_type_ids.astype(jnp.int32).reshape(N, 1)

    grid_spec = pltpu.PrefetchScalarGridSpec(
        num_scalar_prefetch=1,                 # ids -> SMEM (row-lookup indices)
        grid=(N // ROWS,),                     # row tiles, megacore-parallel
        in_specs=[
            pl.BlockSpec((ROWS, 1), lambda i, ids: (i, 0)),        # token types
            pl.BlockSpec((V, E_PAD), lambda i, ids: (0, 0)),       # word table (VMEM)
            pl.BlockSpec((T, E_PAD), lambda i, ids: (0, 0)),       # type table
            pl.BlockSpec((ROWS, E_PAD), lambda i, ids: (0, 0)),    # position rows
            pl.BlockSpec((E_PAD, H_PAD), lambda i, ids: (0, 0)),   # fused proj W (bf16)
            pl.BlockSpec((1, H_PAD), lambda i, ids: (0, 0)),       # fused proj b
        ],
        out_specs=pl.BlockSpec((ROWS, H_PAD), lambda i, ids: (i, 0)),
        scratch_shapes=[
            pltpu.VMEM((ROWS, E_PAD), jnp.float32),    # gathered word rows
        ],
    )

    kernel = functools.partial(bert_embeddings_kernel,
                               e_true=float(E), eps=LAYER_NORM_EPS)

    out = pl.pallas_call(
        kernel,
        out_shape=jax.ShapeDtypeStruct((N, H_PAD), jnp.float32),
        grid_spec=grid_spec,
        compiler_params=pltpu.CompilerParams(
            dimension_semantics=("parallel",),
            vmem_limit_bytes=32 * 1024 * 1024,
        ),
    )(ids, tt, word, typ, pos_block, w_fused, b_fused)

    out = out.reshape(B, S, H_PAD)
    # H = 64 here (not a multiple of 128) so one slice is unavoidable; at real BERT
    # widths (H % 128 == 0) H_PAD == H and the kernel output is returned directly.
    return out if H_PAD == H else out[:, :, :H]


def make_params(key):
    ks = jax.random.split(key, 7)
    return {
        "word_emb": jax.random.normal(ks[0], (VOCAB_SIZE, EMBEDDING_WIDTH), jnp.float32) * 0.02,
        "type_emb": jax.random.normal(ks[1], (TYPE_VOCAB_SIZE, EMBEDDING_WIDTH), jnp.float32) * 0.02,
        "pos_emb": jax.random.normal(ks[2], (MAX_POSITION_EMBEDDINGS, EMBEDDING_WIDTH), jnp.float32) * 0.02,
        "ln_gamma": 1.0 + 0.1 * jax.random.normal(ks[3], (EMBEDDING_WIDTH,), jnp.float32),
        "ln_beta": 0.1 * jax.random.normal(ks[4], (EMBEDDING_WIDTH,), jnp.float32),
        # PyTorch Linear stores weight (H, E); kept pre-transposed (E, H) for x @ W.
        "proj_w": jax.random.normal(ks[5], (EMBEDDING_WIDTH, HIDDEN_WIDTH), jnp.float32) * 0.02,
        "proj_b": jax.random.normal(ks[6], (HIDDEN_WIDTH,), jnp.float32) * 0.02,
    }


def reference(input_ids, token_type_ids, params):
    emb = params["word_emb"][input_ids]
    emb = emb + params["type_emb"][token_type_ids]
    pos_ids = jnp.arange(input_ids.shape[1])[None, :]
    emb = emb + params["pos_emb"][pos_ids]
    mean = jnp.mean(emb, axis=-1, keepdims=True)
    var = jnp.mean((emb - mean) ** 2, axis=-1, keepdims=True)
    normed = (emb - mean) / jnp.sqrt(var + LAYER_NORM_EPS)
    normed = normed * params["ln_gamma"] + params["ln_beta"]
    return normed @ params["proj_w"] + params["proj_b"]


if __name__ == "__main__":
    key = jax.random.PRNGKey(0)
    k_ids, k_tt, k_params = jax.random.split(key, 3)

    input_ids = jax.random.randint(k_ids, (BATCH, SEQ), 0, VOCAB_SIZE, dtype=jnp.int32)
    token_type_ids = jax.random.randint(k_tt, (BATCH, SEQ), 0, TYPE_VOCAB_SIZE, dtype=jnp.int32)
    params = make_params(k_params)

    out = bert_embeddings(input_ids, token_type_ids, params)
    out = jax.block_until_ready(out)

    ref = reference(input_ids, token_type_ids, params)
    assert out.shape == (BATCH, SEQ, HIDDEN_WIDTH)
    # Tolerance sized for the bf16 MXU projection (reference matmul is f32).
    assert jnp.allclose(out, ref, atol=2e-2, rtol=2e-2), float(jnp.max(jnp.abs(out - ref)))

    print("KERNEL_OK")
</pallas_src>

<mosaic_0001>
module attributes {stable_mosaic.version = 11 : i64} {
  func.func @bert_embeddings_kernel(%arg0: i32, %arg1: memref<16xi32, #tpu.memory_space<smem>>, %arg2: memref<8x1xi32, #tpu.memory_space<vmem>>, %arg3: memref<128x128xf32, #tpu.memory_space<vmem>>, %arg4: memref<2x128xf32, #tpu.memory_space<vmem>>, %arg5: memref<8x128xf32, #tpu.memory_space<vmem>>, %arg6: memref<128x128xbf16, #tpu.memory_space<vmem>>, %arg7: memref<1x128xf32, #tpu.memory_space<vmem>>, %arg8: memref<8x128xf32, #tpu.memory_space<vmem>>, %arg9: memref<8x128xf32, #tpu.memory_space<vmem>>) attributes {dimension_semantics = [#tpu.dimension_semantics<parallel>], iteration_bounds = array<i64: 2>, scalar_prefetch = 1 : i64, scratch_operands = 1 : i64, tpu.core_type = #tpu.core_type<tc>, window_params = [{transform_indices = @transform_0, window_bounds = array<i64: 8, 1>}, {pipeline_mode = #tpu.pipeline_mode<synchronous>, transform_indices = @transform_1, window_bounds = array<i64: 128, 128>}, {pipeline_mode = #tpu.pipeline_mode<synchronous>, transform_indices = @transform_2, window_bounds = array<i64: 2, 128>}, {pipeline_mode = #tpu.pipeline_mode<synchronous>, transform_indices = @transform_3, window_bounds = array<i64: 8, 128>}, {pipeline_mode = #tpu.pipeline_mode<synchronous>, transform_indices = @transform_4, window_bounds = array<i64: 128, 128>}, {pipeline_mode = #tpu.pipeline_mode<synchronous>, transform_indices = @transform_5, window_bounds = array<i64: 1, 128>}, {transform_indices = @transform_6, window_bounds = array<i64: 8, 128>}]} {
    %c8_i32 = arith.constant 8 : i32
    %0 = arith.muli %arg0, %c8_i32 : i32
    %c0_i32 = arith.constant 0 : i32
    %1 = arith.addi %0, %c0_i32 : i32
    %2 = arith.index_cast %1 : i32 to index
    %3 = memref.load %arg1[%2] : memref<16xi32, #tpu.memory_space<smem>>
    %4 = arith.index_cast %3 : i32 to index
    %c0 = arith.constant 0 : index
    %5 = vector.load %arg3[%4, %c0] : memref<128x128xf32, #tpu.memory_space<vmem>>, vector<1x128xf32>
    %c0_0 = arith.constant 0 : index
    %c0_1 = arith.constant 0 : index
    %6 = vector.load %arg9[%c0_0, %c0_1] : memref<8x128xf32, #tpu.memory_space<vmem>>, vector<1x128xf32>
    tpu.vector_store %arg9[%c0_0, %c0_1], %5 {strides = array<i32>} : memref<8x128xf32, #tpu.memory_space<vmem>>, vector<1x128xf32>,
    %c1_i32 = arith.constant 1 : i32
    %7 = arith.addi %0, %c1_i32 : i32
    %8 = arith.index_cast %7 : i32 to index
    %9 = memref.load %arg1[%8] : memref<16xi32, #tpu.memory_space<smem>>
    %10 = arith.index_cast %9 : i32 to index
    %c0_2 = arith.constant 0 : index
    %11 = vector.load %arg3[%10, %c0_2] : memref<128x128xf32, #tpu.memory_space<vmem>>, vector<1x128xf32>
    %c1 = arith.constant 1 : index
    %c0_3 = arith.constant 0 : index
    %12 = vector.load %arg9[%c1, %c0_3] : memref<8x128xf32, #tpu.memory_space<vmem>>, vector<1x128xf32>
    tpu.vector_store %arg9[%c1, %c0_3], %11 {strides = array<i32>} : memref<8x128xf32, #tpu.memory_space<vmem>>, vector<1x128xf32>,
    %c2_i32 = arith.constant 2 : i32
    %13 = arith.addi %0, %c2_i32 : i32
    %14 = arith.index_cast %13 : i32 to index
    %15 = memref.load %arg1[%14] : memref<16xi32, #tpu.memory_space<smem>>
    %16 = arith.index_cast %15 : i32 to index
    %c0_4 = arith.constant 0 : index
    %17 = vector.load %arg3[%16, %c0_4] : memref<128x128xf32, #tpu.memory_space<vmem>>, vector<1x128xf32>
    %c2 = arith.constant 2 : index
    %c0_5 = arith.constant 0 : index
    %18 = vector.load %arg9[%c2, %c0_5] : memref<8x128xf32, #tpu.memory_space<vmem>>, vector<1x128xf32>
    tpu.vector_store %arg9[%c2, %c0_5], %17 {strides = array<i32>} : memref<8x128xf32, #tpu.memory_space<vmem>>, vector<1x128xf32>,
    %c3_i32 = arith.constant 3 : i32
    %19 = arith.addi %0, %c3_i32 : i32
    %20 = arith.index_cast %19 : i32 to index
    %21 = memref.load %arg1[%20] : memref<16xi32, #tpu.memory_space<smem>>
    %22 = arith.index_cast %21 : i32 to index
    %c0_6 = arith.constant 0 : index
    %23 = vector.load %arg3[%22, %c0_6] : memref<128x128xf32, #tpu.memory_space<vmem>>, vector<1x128xf32>
    %c3 = arith.constant 3 : index
    %c0_7 = arith.constant 0 : index
    %24 = vector.load %arg9[%c3, %c0_7] : memref<8x128xf32, #tpu.memory_space<vmem>>, vector<1x128xf32>
    tpu.vector_store %arg9[%c3, %c0_7], %23 {strides = array<i32>} : memref<8x128xf32, #tpu.memory_space<vmem>>, vector<1x128xf32>,
    %c4_i32 = arith.constant 4 : i32
    %25 = arith.addi %0, %c4_i32 : i32
    %26 = arith.index_cast %25 : i32 to index
    %27 = memref.load %arg1[%26] : memref<16xi32, #tpu.memory_space<smem>>
    %28 = arith.index_cast %27 : i32 to index
    %c0_8 = arith.constant 0 : index
    %29 = vector.load %arg3[%28, %c0_8] : memref<128x128xf32, #tpu.memory_space<vmem>>, vector<1x128xf32>
    %c4 = arith.constant 4 : index
    %c0_9 = arith.constant 0 : index
    %30 = vector.load %arg9[%c4, %c0_9] : memref<8x128xf32, #tpu.memory_space<vmem>>, vector<1x128xf32>
    tpu.vector_store %arg9[%c4, %c0_9], %29 {strides = array<i32>} : memref<8x128xf32, #tpu.memory_space<vmem>>, vector<1x128xf32>,
    %c5_i32 = arith.constant 5 : i32
    %31 = arith.addi %0, %c5_i32 : i32
    %32 = arith.index_cast %31 : i32 to index
    %33 = memref.load %arg1[%32] : memref<16xi32, #tpu.memory_space<smem>>
    %34 = arith.index_cast %33 : i32 to index
    %c0_10 = arith.constant 0 : index
    %35 = vector.load %arg3[%34, %c0_10] : memref<128x128xf32, #tpu.memory_space<vmem>>, vector<1x128xf32>
    %c5 = arith.constant 5 : index
    %c0_11 = arith.constant 0 : index
    %36 = vector.load %arg9[%c5, %c0_11] : memref<8x128xf32, #tpu.memory_space<vmem>>, vector<1x128xf32>
    tpu.vector_store %arg9[%c5, %c0_11], %35 {strides = array<i32>} : memref<8x128xf32, #tpu.memory_space<vmem>>, vector<1x128xf32>,
    %c6_i32 = arith.constant 6 : i32
    %37 = arith.addi %0, %c6_i32 : i32
    %38 = arith.index_cast %37 : i32 to index
    %39 = memref.load %arg1[%38] : memref<16xi32, #tpu.memory_space<smem>>
    %40 = arith.index_cast %39 : i32 to index
    %c0_12 = arith.constant 0 : index
    %41 = vector.load %arg3[%40, %c0_12] : memref<128x128xf32, #tpu.memory_space<vmem>>, vector<1x128xf32>
    %c6 = arith.constant 6 : index
    %c0_13 = arith.constant 0 : index
    %42 = vector.load %arg9[%c6, %c0_13] : memref<8x128xf32, #tpu.memory_space<vmem>>, vector<1x128xf32>
    tpu.vector_store %arg9[%c6, %c0_13], %41 {strides = array<i32>} : memref<8x128xf32, #tpu.memory_space<vmem>>, vector<1x128xf32>,
    %c7_i32 = arith.constant 7 : i32
    %43 = arith.addi %0, %c7_i32 : i32
    %44 = arith.index_cast %43 : i32 to index
    %45 = memref.load %arg1[%44] : memref<16xi32, #tpu.memory_space<smem>>
    %46 = arith.index_cast %45 : i32 to index
    %c0_14 = arith.constant 0 : index
    %47 = vector.load %arg3[%46, %c0_14] : memref<128x128xf32, #tpu.memory_space<vmem>>, vector<1x128xf32>
    %c7 = arith.constant 7 : index
    %c0_15 = arith.constant 0 : index
    %48 = vector.load %arg9[%c7, %c0_15] : memref<8x128xf32, #tpu.memory_space<vmem>>, vector<1x128xf32>
    tpu.vector_store %arg9[%c7, %c0_15], %47 {strides = array<i32>} : memref<8x128xf32, #tpu.memory_space<vmem>>, vector<1x128xf32>,
    %c0_16 = arith.constant 0 : index
    %c0_17 = arith.constant 0 : index
    %49 = vector.load %arg9[%c0_16, %c0_17] : memref<8x128xf32, #tpu.memory_space<vmem>>, vector<8x128xf32>
    %c0_18 = arith.constant 0 : index
    %c0_19 = arith.constant 0 : index
    %50 = vector.load %arg2[%c0_18, %c0_19] : memref<8x1xi32, #tpu.memory_space<vmem>>, vector<8x1xi32>
    %c0_i32_20 = arith.constant 0 : i32
    %51 = vector.broadcast %c0_i32_20 : i32 to vector<8x1xi32>
    %52 = arith.cmpi eq, %50, %51 : vector<8x1xi32>
    %c0_21 = arith.constant 0 : index
    %c0_22 = arith.constant 0 : index
    %53 = vector.load %arg4[%c0_21, %c0_22] : memref<2x128xf32, #tpu.memory_space<vmem>>, vector<1x128xf32>
    %c1_23 = arith.constant 1 : index
    %c0_24 = arith.constant 0 : index
    %54 = vector.load %arg4[%c1_23, %c0_24] : memref<2x128xf32, #tpu.memory_space<vmem>>, vector<1x128xf32>
    %55 = vector.shape_cast %52 : vector<8x1xi1> to vector<8x1xi1>
    %56 = vector.broadcast %55 : vector<8x1xi1> to vector<8x128xi1>
    %57 = vector.shape_cast %53 : vector<1x128xf32> to vector<1x128xf32>
    %58 = vector.broadcast %57 : vector<1x128xf32> to vector<8x128xf32>
    %59 = vector.shape_cast %54 : vector<1x128xf32> to vector<1x128xf32>
    %60 = vector.broadcast %59 : vector<1x128xf32> to vector<8x128xf32>
    %61 = arith.select %56, %58, %60 : vector<8x128xi1>, vector<8x128xf32>
    %62 = arith.addf %49, %61 : vector<8x128xf32>
    %c0_25 = arith.constant 0 : index
    %c0_26 = arith.constant 0 : index
    %63 = vector.load %arg5[%c0_25, %c0_26] : memref<8x128xf32, #tpu.memory_space<vmem>>, vector<8x128xf32>
    %64 = arith.addf %62, %63 : vector<8x128xf32>
    %cst = arith.constant dense<0.000000e+00> : vector<8xf32>
    %65 = vector.multi_reduction <add>, %64, %cst [1] : vector<8x128xf32> to vector<8xf32>
    %66 = vector.shape_cast %65 : vector<8xf32> to vector<8x1xf32>
    %cst_27 = arith.constant 3.125000e-02 : f32
    %67 = vector.broadcast %cst_27 : f32 to vector<8x1xf32>
    %68 = arith.mulf %66, %67 : vector<8x1xf32>
    %69 = arith.mulf %64, %64 : vector<8x128xf32>
    %cst_28 = arith.constant dense<0.000000e+00> : vector<8xf32>
    %70 = vector.multi_reduction <add>, %69, %cst_28 [1] : vector<8x128xf32> to vector<8xf32>
    %71 = vector.shape_cast %70 : vector<8xf32> to vector<8x1xf32>
    %cst_29 = arith.constant 3.125000e-02 : f32
    %72 = vector.broadcast %cst_29 : f32 to vector<8x1xf32>
    %73 = arith.mulf %71, %72 : vector<8x1xf32>
    %74 = arith.mulf %68, %68 : vector<8x1xf32>
    %75 = arith.subf %73, %74 : vector<8x1xf32>
    %cst_30 = arith.constant 0.000000e+00 : f32
    %76 = vector.broadcast %cst_30 : f32 to vector<8x1xf32>
    %77 = arith.maximumf %75, %76 : vector<8x1xf32>
    %78 = vector.broadcast %68 : vector<8x1xf32> to vector<8x128xf32>
    %79 = arith.subf %64, %78 : vector<8x128xf32>
    %cst_31 = arith.constant 9.99999996E-13 : f32
    %80 = vector.broadcast %cst_31 : f32 to vector<8x1xf32>
    %81 = arith.addf %77, %80 : vector<8x1xf32>
    %82 = math.rsqrt %81 : vector<8x1xf32>
    %83 = vector.broadcast %82 : vector<8x1xf32> to vector<8x128xf32>
    %84 = arith.mulf %79, %83 : vector<8x128xf32>
    %85 = arith.truncf %84 : vector<8x128xf32> to vector<8x128xbf16>
    %c0_32 = arith.constant 0 : index
    %c0_33 = arith.constant 0 : index
    %86 = vector.load %arg6[%c0_32, %c0_33] : memref<128x128xbf16, #tpu.memory_space<vmem>>, vector<128x128xbf16>
    %cst_34 = arith.constant dense<0.000000e+00> : vector<8x128xf32>
    %87 = tpu.matmul %85, %86, %cst_34 {dimension_numbers = #tpu.dot_dimension_numbers<[1], [0], [0], [1], [0, 0, 1, 1], [], []>} : vector<8x128xbf16>, vector<128x128xbf16>, vector<8x128xf32> -> vector<8x128xf32>
    %c0_35 = arith.constant 0 : index
    %c0_36 = arith.constant 0 : index
    %88 = vector.load %arg7[%c0_35, %c0_36] : memref<1x128xf32, #tpu.memory_space<vmem>>, vector<1x128xf32>
    %89 = vector.broadcast %88 : vector<1x128xf32> to vector<8x128xf32>
    %90 = arith.addf %87, %89 : vector<8x128xf32>
    %c0_37 = arith.constant 0 : index
    %c0_38 = arith.constant 0 : index
    %91 = vector.load %arg8[%c0_37, %c0_38] : memref<8x128xf32, #tpu.memory_space<vmem>>, vector<8x128xf32>
    tpu.vector_store %arg8[%c0_37, %c0_38], %90 {strides = array<i32>} : memref<8x128xf32, #tpu.memory_space<vmem>>, vector<8x128xf32>,
    return
  }
  func.func @transform_0(%arg0: i32, %arg1: memref<16xi32, #tpu.memory_space<smem>>) -> (i32, i32) {
    %c0_i32 = arith.constant 0 : i32
    %c0_i32_0 = arith.constant 0 : i32
    return %arg0, %c0_i32 : i32, i32
  }
  func.func @transform_1(%arg0: i32, %arg1: memref<16xi32, #tpu.memory_space<smem>>) -> (i32, i32) {
    %c0_i32 = arith.constant 0 : i32
    %c0_i32_0 = arith.constant 0 : i32
    %c0_i32_1 = arith.constant 0 : i32
    return %c0_i32, %c0_i32_0 : i32, i32
  }
  func.func @transform_2(%arg0: i32, %arg1: memref<16xi32, #tpu.memory_space<smem>>) -> (i32, i32) {
    %c0_i32 = arith.constant 0 : i32
    %c0_i32_0 = arith.constant 0 : i32
    %c0_i32_1 = arith.constant 0 : i32
    return %c0_i32, %c0_i32_0 : i32, i32
  }
  func.func @transform_3(%arg0: i32, %arg1: memref<16xi32, #tpu.memory_space<smem>>) -> (i32, i32) {
    %c0_i32 = arith.constant 0 : i32
    %c0_i32_0 = arith.constant 0 : i32
    %c0_i32_1 = arith.constant 0 : i32
    return %c0_i32, %c0_i32_0 : i32, i32
  }
  func.func @transform_4(%arg0: i32, %arg1: memref<16xi32, #tpu.memory_space<smem>>) -> (i32, i32) {
    %c0_i32 = arith.constant 0 : i32
    %c0_i32_0 = arith.constant 0 : i32
    %c0_i32_1 = arith.constant 0 : i32
    return %c0_i32, %c0_i32_0 : i32, i32
  }
  func.func @transform_5(%arg0: i32, %arg1: memref<16xi32, #tpu.memory_space<smem>>) -> (i32, i32) {
    %c0_i32 = arith.constant 0 : i32
    %c0_i32_0 = arith.constant 0 : i32
    %c0_i32_1 = arith.constant 0 : i32
    return %c0_i32, %c0_i32_0 : i32, i32
  }
  func.func @transform_6(%arg0: i32, %arg1: memref<16xi32, #tpu.memory_space<smem>>) -> (i32, i32) {
    %c0_i32 = arith.constant 0 : i32
    %c0_i32_0 = arith.constant 0 : i32
    return %arg0, %c0_i32 : i32, i32
  }
}

</mosaic_0001>

<llo_original>
// kernel: tpu_custom_call.1
$region0: #{tpu_custom_call.1}
  #allocation0 [shape = 'u32[]', space=smem, size = 0x4, offset = 0x4, fixed_abs, tag = 'smem constant byte address 0x4 - core index']
  #allocation1 [shape = 'u32[144,128]{1,0:T(1,128)}', space=vmem, size = 0x12000, scoped, tag = 'internal scratch']
  #allocation2 [shape = 'f32[8,128]{1,0:T(8,128)}', space=vmem, size = 0x1000, scoped, tag = 'scratch operand']
  #allocation3 [shape = 's32[1]{0}', space=sflag, size = 0x4, scoped, tag = 'scoped memory for tpu_custom_call.1']
  #allocation4 [shape = 'u8[512]{0}', space=smem, size = 0x200, scoped, tag = 'prefetched SMEM operand 0']
  %s0 = inlined_call_operand.vmem [shape: s32[16], index: 0, kind: input, shape index: {}]
  %s1 = inlined_call_operand.vmem [shape: s32[16,1], index: 1, kind: input, shape index: {}]
  %s2 = inlined_call_operand.hbm [shape: f32[128,128], index: 2, kind: input, shape index: {}]
  %s3 = inlined_call_operand.vmem [shape: f32[2,128], index: 3, kind: input, shape index: {}]
  %s4 = inlined_call_operand.vmem [shape: f32[8,128], index: 4, kind: input, shape index: {}]
  %s5 = inlined_call_operand.hbm [shape: bf16[128,128], index: 5, kind: input, shape index: {}]
  %s6 = inlined_call_operand.vmem [shape: f32[1,128], index: 6, kind: input, shape index: {}]
  %s7 = inlined_call_operand.hbm [shape: f32[16,128], index: 7, kind: output, shape index: {}]
  %s8 = sld [smem:[#allocation0]]
  $region65: #{tpu_custom_call.1} parent=0
    _
  %s10 = ssub.s32 1, %s8
  %s11 = scalar_select 0, %s10, %s8
  %s12 = sshll.u32 %s0, 4
  %s13 = int_to_ptr.vmem [resolvable:$true] %s12
  %15 = dma.vmem_to_smem %s13, 16, [#allocation4], [#allocation3]
  %16 = dma.done [#allocation3], 16
  %17 = sfence
  $region1: #{tpu_custom_call.1} parent=0
    #allocation5 [shape = 'u8[65536]{0}', space=vmem, size = 0x10000, scoped, tag = 'input window, operand 2, single buffered']
    #allocation6 [shape = 's32[2]{0}', space=sflag, size = 0x8, scoped, tag = 'scoped memory for tpu_custom_call.1']
    #allocation7 [shape = 's32[2]{0}', space=sflag, size = 0x8, scoped, tag = 'scoped memory for tpu_custom_call.1']
    #allocation8 [shape = 'u8[32768]{0}', space=vmem, size = 0x8000, scoped, tag = 'input window, operand 5, single buffered']
    #allocation9 [shape = 's32[1]{0}', space=sflag, size = 0x4, scoped, tag = 'scoped memory for tpu_custom_call.1']
    #allocation10 [shape = 'u8[8192]{0}', space=vmem, size = 0x2000, scoped, tag = 'output window, operand 0']
    %18 = vsyncpa [#allocation6], 0
    %19 = vsyncpa [#allocation9], 0
    %20 = vsyncpa [#allocation7], 0
    %s21 = scalar_lea.sflag [#allocation7], 1
    %22 = vsyncpa %s21, 0
    loop: start=0, step=1, limit=4
    $region2: #{tpu_custom_call.1} parent=1 // loop_pre_header
      _
    $region3: #{tpu_custom_call.1} parent=1 // loop_header
      %s24 = sphi 0, %s28
      %p25 = scmp.ge.s32.totalorder %s24, 4
      %s34 = sphi 0, %s36
      %s37 = sphi 0, %s34
      %s38 = sphi 0, %s37
      %s54 = sphi 0, %s38
      %s58 = sphi 0, %s58
      %s60 = sphi 0, %s58
      %s61 = sphi 0, %s60
      %s75 = sphi 0, %s61
      %s79 = sphi 0, %s79
      %s81 = sphi 0, %s79
      %s82 = sphi 0, %s81
      %s96 = sphi 0, %s82
      %s100 = sphi 0, %s100
      %s102 = sphi 0, %s100
      %s103 = sphi 0, %s102
      %s117 = sphi 0, %s103
      %s121 = sphi 0, %s121
      %s123 = sphi 0, %s121
      %s124 = sphi 0, %s123
      %s138 = sphi 0, %s124
      %s142 = sphi 0, %s142
      %s144 = sphi 0, %s142
      %s145 = sphi 0, %s144
      %s159 = sphi 0, %s145
      %s165 = sphi 0, %s167
      %s168 = sphi 0, %s165
      %s169 = sphi 0, %s168
      %s185 = sphi 0, %s169
    $region4: #{tpu_custom_call.1} parent=1 // loop_header_branch
      %27 = sbr.rel (%p25) target = $region8
    $region5: #{tpu_custom_call.1} parent=1 // loop_body
      %s29 = ssub.s32 %s24, 1
      %s30 = ssub.s32 %s24, 2
      %s31 = sadd.s32 %s24, 1
      %s32 = ssub.s32 %s24, %s31
      %p33 = scmp.eq.s32.totalorder %s32, 0
      %s35 = sadd.s32 %s34, 1
      %s36 = scalar_select %p33, %s34, %s35
      %p39 = pneg %p33
      %p40 = scmp.eq.s32.totalorder %s24, 1
      %p41 = por %p39, %p40
      %p42 = scmp.ne.s32.totalorder %s34, %s37
      %p43 = scmp.eq.s32.totalorder %s24, 0
      %p44 = por %p42, %p43
      %p45 = scmp.ne.s32.totalorder %s34, %s37
      %p46 = scmp.eq.s32.totalorder %s29, 1
      %p47 = por %p45, %p46
      %p48 = scmp.ne.s32.totalorder %s37, %s38
      %p49 = scmp.eq.s32.totalorder %s29, 0
      %p50 = por %p48, %p49
      %p51 = scmp.ne.s32.totalorder %s37, %s38
      %p52 = scmp.eq.s32.totalorder %s30, 1
      %p53 = por %p51, %p52
      %p55 = scmp.ne.s32.totalorder %s38, %s54
      %p56 = scmp.eq.s32.totalorder %s30, 0
      %p57 = por %p55, %p56
      %s59 = sadd.s32 %s58, 1
      %p62 = scmp.eq.s32.totalorder %s24, 1
      %p63 = scmp.ne.s32.totalorder %s58, %s60
      %p64 = scmp.eq.s32.totalorder %s24, 0
      %p65 = por %p63, %p64
      %p66 = scmp.ne.s32.totalorder %s58, %s60
      %p67 = scmp.eq.s32.totalorder %s29, 1
      %p68 = por %p66, %p67
      %p69 = scmp.ne.s32.totalorder %s60, %s61
      %p70 = scmp.eq.s32.totalorder %s29, 0
      %p71 = por %p69, %p70
      %p72 = scmp.ne.s32.totalorder %s60, %s61
      %p73 = scmp.eq.s32.totalorder %s30, 1
      %p74 = por %p72, %p73
      %p76 = scmp.ne.s32.totalorder %s61, %s75
      %p77 = scmp.eq.s32.totalorder %s30, 0
      %p78 = por %p76, %p77
      %s80 = sadd.s32 %s79, 1
      %p83 = scmp.eq.s32.totalorder %s24, 1
      %p84 = scmp.ne.s32.totalorder %s79, %s81
      %p85 = scmp.eq.s32.totalorder %s24, 0
      %p86 = por %p84, %p85
      %p87 = scmp.ne.s32.totalorder %s79, %s81
      %p88 = scmp.eq.s32.totalorder %s29, 1
      %p89 = por %p87, %p88
      %p90 = scmp.ne.s32.totalorder %s81, %s82
      %p91 = scmp.eq.s32.totalorder %s29, 0
      %p92 = por %p90, %p91
      %p93 = scmp.ne.s32.totalorder %s81, %s82
      %p94 = scmp.eq.s32.totalorder %s30, 1
      %p95 = por %p93, %p94
      %p97 = scmp.ne.s32.totalorder %s82, %s96
      %p98 = scmp.eq.s32.totalorder %s30, 0
      %p99 = por %p97, %p98
      %s101 = sadd.s32 %s100, 1
      %p104 = scmp.eq.s32.totalorder %s24, 1
      %p105 = scmp.ne.s32.totalorder %s100, %s102
      %p106 = scmp.eq.s32.totalorder %s24, 0
      %p107 = por %p105, %p106
      %p108 = scmp.ne.s32.totalorder %s100, %s102
      %p109 = scmp.eq.s32.totalorder %s29, 1
      %p110 = por %p108, %p109
      %p111 = scmp.ne.s32.totalorder %s102, %s103
      %p112 = scmp.eq.s32.totalorder %s29, 0
      %p113 = por %p111, %p112
      %p114 = scmp.ne.s32.totalorder %s102, %s103
      %p115 = scmp.eq.s32.totalorder %s30, 1
      %p116 = por %p114, %p115
      %p118 = scmp.ne.s32.totalorder %s103, %s117
      %p119 = scmp.eq.s32.totalorder %s30, 0
      %p120 = por %p118, %p119
      %s122 = sadd.s32 %s121, 1
      %p125 = scmp.eq.s32.totalorder %s24, 1
      %p126 = scmp.ne.s32.totalorder %s121, %s123
      %p127 = scmp.eq.s32.totalorder %s24, 0
      %p128 = por %p126, %p127
      %p129 = scmp.ne.s32.totalorder %s121, %s123
      %p130 = scmp.eq.s32.totalorder %s29, 1
      %p131 = por %p129, %p130
      %p132 = scmp.ne.s32.totalorder %s123, %s124
      %p133 = scmp.eq.s32.totalorder %s29, 0
      %p134 = por %p132, %p133
      %p135 = scmp.ne.s32.totalorder %s123, %s124
      %p136 = scmp.eq.s32.totalorder %s30, 1
      %p137 = por %p135, %p136
      %p139 = scmp.ne.s32.totalorder %s124, %s138
      %p140 = scmp.eq.s32.totalorder %s30, 0
      %p141 = por %p139, %p140
      %s143 = sadd.s32 %s142, 1
      %p146 = scmp.eq.s32.totalorder %s24, 1
      %p147 = scmp.ne.s32.totalorder %s142, %s144
      %p148 = scmp.eq.s32.totalorder %s24, 0
      %p149 = por %p147, %p148
      %p150 = scmp.ne.s32.totalorder %s142, %s144
      %p151 = scmp.eq.s32.totalorder %s29, 1
      %p152 = por %p150, %p151
      %p153 = scmp.ne.s32.totalorder %s144, %s145
      %p154 = scmp.eq.s32.totalorder %s29, 0
      %p155 = por %p153, %p154
      %p156 = scmp.ne.s32.totalorder %s144, %s145
      %p157 = scmp.eq.s32.totalorder %s30, 1
      %p158 = por %p156, %p157
      %p160 = scmp.ne.s32.totalorder %s145, %s159
      %p161 = scmp.eq.s32.totalorder %s30, 0
      %p162 = por %p160, %p161
      %s163 = ssub.s32 %s24, %s31
      %p164 = scmp.eq.s32.totalorder %s163, 0
      %s166 = sadd.s32 %s165, 1
      %s167 = scalar_select %p164, %s165, %s166
      %p170 = pneg %p164
      %p171 = scmp.eq.s32.totalorder %s24, 1
      %p172 = por %p170, %p171
      %p173 = scmp.ne.s32.totalorder %s165, %s168
      %p174 = scmp.eq.s32.totalorder %s24, 0
      %p175 = por %p173, %p174
      %p176 = scmp.ne.s32.totalorder %s165, %s168
      %p177 = scmp.eq.s32.totalorder %s29, 1
      %p178 = por %p176, %p177
      %p179 = scmp.ne.s32.totalorder %s168, %s169
      %p180 = scmp.eq.s32.totalorder %s29, 0
      %p181 = por %p179, %p180
      %p182 = scmp.ne.s32.totalorder %s168, %s169
      %p183 = scmp.eq.s32.totalorder %s30, 1
      %p184 = por %p182, %p183
      %p186 = scmp.ne.s32.totalorder %s169, %s185
      %p187 = scmp.eq.s32.totalorder %s30, 0
      %p188 = por %p186, %p187
      %p189 = scmp.le.s32.totalorder 1, %s24
      %p190 = scmp.lt.s32.totalorder %s24, 3
      %p191 = pnand %p189, %p190
      %p192 = pneg %p191
      // Predicated region
      $region9: #{tpu_custom_call.1} parent=5 // pred_check
        _
      $region10: #{tpu_custom_call.1} parent=5 // pred_check_branch
        %194 = sbr.rel (%p191) target = $region12
      $region11: #{tpu_custom_call.1} parent=5 // pred_region
        %s195 = ssub.s32 %s24, 1
        // Predicated region
        $region13: #{tpu_custom_call.1} parent=11 // pred_check
          %p196 = pneg %p71
        $region14: #{tpu_custom_call.1} parent=11 // pred_check_branch
          %198 = sbr.rel (%p196) target = $region16
        $region15: #{tpu_custom_call.1} parent=11 // pred_region
          %s200 = ssub.s32 2048, 2048
          %201 = vsyncadd [#allocation6], %s200
          %s202 = sshll.u32 [#allocation5], 4
          %s203 = int_to_ptr.vmem [resolvable:$true] %s202
          %208 = dma.hbm_to_vmem [thread:$0]  %s2, 2048, %s203, [#allocation6], 128, 128, 8
        $region16: #{tpu_custom_call.1} parent=11 // pred_fallthru
          _
        // Predicated region
        $region17: #{tpu_custom_call.1} parent=11 // pred_check
          %p209 = pneg %p92
        $region18: #{tpu_custom_call.1} parent=11 // pred_check_branch
          %211 = sbr.rel (%p209) target = $region20
        $region19: #{tpu_custom_call.1} parent=11 // pred_region
          _
        $region20: #{tpu_custom_call.1} parent=11 // pred_fallthru
          _
        // Predicated region
        $region21: #{tpu_custom_call.1} parent=11 // pred_check
          %p212 = pneg %p113
        $region22: #{tpu_custom_call.1} parent=11 // pred_check_branch
          %214 = sbr.rel (%p212) target = $region24
        $region23: #{tpu_custom_call.1} parent=11 // pred_region
          _
        $region24: #{tpu_custom_call.1} parent=11 // pred_fallthru
          _
        // Predicated region
        $region25: #{tpu_custom_call.1} parent=11 // pred_check
          %p215 = pneg %p134
        $region26: #{tpu_custom_call.1} parent=11 // pred_check_branch
          %217 = sbr.rel (%p215) target = $region28
        $region27: #{tpu_custom_call.1} parent=11 // pred_region
          %s219 = ssub.s32 1024, 1024
          %220 = vsyncadd [#allocation9], %s219
          %s221 = sshll.u32 [#allocation8], 4
          %s222 = int_to_ptr.vmem [resolvable:$true] %s221
          %227 = dma.hbm_to_vmem [thread:$0]  %s5, 1024, %s222, [#allocation9], 64, 64, 4
        $region28: #{tpu_custom_call.1} parent=11 // pred_fallthru
          _
        // Predicated region
        $region29: #{tpu_custom_call.1} parent=11 // pred_check
          %p228 = pneg %p155
        $region30: #{tpu_custom_call.1} parent=11 // pred_check_branch
          %230 = sbr.rel (%p228) target = $region32
        $region31: #{tpu_custom_call.1} parent=11 // pred_region
          _
        $region32: #{tpu_custom_call.1} parent=11 // pred_fallthru
          _
      $region12: #{tpu_custom_call.1} parent=5 // pred_fallthru
        _
      %p231 = scmp.lt.s32.totalorder %s24, 2
      // Predicated region
      $region33: #{tpu_custom_call.1} parent=5 // pred_check
        %p232 = pneg %p231
      $region34: #{tpu_custom_call.1} parent=5 // pred_check_branch
        %234 = sbr.rel (%p232) target = $region36
      $region35: #{tpu_custom_call.1} parent=5 // pred_region
        // Predicated region
        $region37: #{tpu_custom_call.1} parent=35 // pred_check
          %p235 = pneg %p44
        $region38: #{tpu_custom_call.1} parent=35 // pred_check_branch
          %237 = sbr.rel (%p235) target = $region40
        $region39: #{tpu_custom_call.1} parent=35 // pred_region
          %p238 = scmp.lt.s32.totalorder %s24, 1
          %s239 = scalar_select %p238, %s24, 1
          %s240 = smul.addr %s239, 8
          %s241 = scalar_lea.vmem %s1, %s240
        $region40: #{tpu_custom_call.1} parent=35 // pred_fallthru
          _
      $region36: #{tpu_custom_call.1} parent=5 // pred_fallthru
        _
      %p242 = scmp.le.s32.totalorder 1, %s24
      %p243 = scmp.lt.s32.totalorder %s24, 3
      %p244 = pnand %p242, %p243
      %p245 = pneg %p244
      // Predicated region
      $region41: #{tpu_custom_call.1} parent=5 // pred_check
        _
      $region42: #{tpu_custom_call.1} parent=5 // pred_check_branch
        %247 = sbr.rel (%p244) target = $region44
      $region43: #{tpu_custom_call.1} parent=5 // pred_region
        %s248 = ssub.s32 %s24, 1
        // Predicated region
        $region45: #{tpu_custom_call.1} parent=43 // pred_check
          %p249 = pneg %p71
        $region46: #{tpu_custom_call.1} parent=43 // pred_check_branch
          %251 = sbr.rel (%p249) target = $region48
        $region47: #{tpu_custom_call.1} parent=43 // pred_region
          %252 = dma.done [#allocation6], 2048
        $region48: #{tpu_custom_call.1} parent=43 // pred_fallthru
          _
        // Predicated region
        $region49: #{tpu_custom_call.1} parent=43 // pred_check
          %p253 = pneg %p134
        $region50: #{tpu_custom_call.1} parent=43 // pred_check_branch
          %255 = sbr.rel (%p253) target = $region52
        $region51: #{tpu_custom_call.1} parent=43 // pred_region
          %256 = dma.done [#allocation9], 1024
        $region52: #{tpu_custom_call.1} parent=43 // pred_fallthru
          _
        %p257 = scmp.lt.s32.totalorder %s29, 1
        %s258 = scalar_select %p257, %s29, 1
        %s259 = smul.addr %s258, 8
        %s260 = scalar_lea.vmem %s1, %s259
        %p261 = pneg %p50
        %p262 = pneg %p47
        %p263 = pneg %p71
        %p264 = pneg %p68
        %p265 = pneg %p92
        %p266 = pneg %p89
        %p267 = pneg %p113
        %p268 = pneg %p110
        %p269 = pneg %p134
        %p270 = pneg %p131
        %p271 = pneg %p155
        %p272 = pneg %p152
        %p273 = pneg %p181
        %p274 = pneg %p178
        %s275 = sand.u32 %s168, 1
        %s276 = scalar_lea.sflag [#allocation7], %s275
        %s277 = sand.u32 %s168, 1
        %s278 = smul.addr %s277, 8
        %s279 = scalar_lea.vmem [#allocation10], %s278
        %p280 = scmp.lt.s32.totalorder %s29, 1
        %s281 = scalar_select %p280, %s29, 1
        %s282 = smul.addr %s281, 8
        %s283 = scalar_lea.vmem %s1, %s282
        %s285 = smul.u32 %s29, 8
        %s286 = sld [smem:[#allocation4 + %s285]]
        %s287 = scalar_lea.vmem [#allocation5], %s286
        %v288 = vld [vmem:[%s287] sm:$0x1]
        %289 = vst [vmem:[#allocation2] sm:$0x1] %v288
        %s290 = sadd.s32 %s285, 1
        %s291 = sld [smem:[#allocation4 + %s290]]
        %s292 = scalar_lea.vmem [#allocation5], %s291
        %v293 = vld [vmem:[%s292] sm:$0x1]
        %294 = vst [vmem:[#allocation2 + $0x1] sm:$0x1] %v293
        %s295 = sadd.s32 %s285, 2
        %s296 = sld [smem:[#allocation4 + %s295]]
        %s297 = scalar_lea.vmem [#allocation5], %s296
        %v298 = vld [vmem:[%s297] sm:$0x1]
        %299 = vst [vmem:[#allocation2 + $0x2] sm:$0x1] %v298
        %s300 = sadd.s32 %s285, 3
        %s301 = sld [smem:[#allocation4 + %s300]]
        %s302 = scalar_lea.vmem [#allocation5], %s301
        %v303 = vld [vmem:[%s302] sm:$0x1]
        %304 = vst [vmem:[#allocation2 + $0x3] sm:$0x1] %v303
        %s305 = sadd.s32 %s285, 4
        %s306 = sld [smem:[#allocation4 + %s305]]
        %s307 = scalar_lea.vmem [#allocation5], %s306
        %v308 = vld [vmem:[%s307] sm:$0x1]
        %309 = vst [vmem:[#allocation2 + $0x4] sm:$0x1] %v308
        %s310 = sadd.s32 %s285, 5
        %s311 = sld [smem:[#allocation4 + %s310]]
        %s312 = scalar_lea.vmem [#allocation5], %s311
        %v313 = vld [vmem:[%s312] sm:$0x1]
        %314 = vst [vmem:[#allocation2 + $0x5] sm:$0x1] %v313
        %s315 = sadd.s32 %s285, 6
        %s316 = sld [smem:[#allocation4 + %s315]]
        %s317 = scalar_lea.vmem [#allocation5], %s316
        %v318 = vld [vmem:[%s317] sm:$0x1]
        %319 = vst [vmem:[#allocation2 + $0x6] sm:$0x1] %v318
        %s320 = sadd.s32 %s285, 7
        %s321 = sld [smem:[#allocation4 + %s320]]
        %s322 = scalar_lea.vmem [#allocation5], %s321
        %v323 = vld [vmem:[%s322] sm:$0x1]
        %324 = vst [vmem:[#allocation2 + $0x7] sm:$0x1] %v323
        %v325 = vld [vmem:[#allocation2] sm:$0xff]
        %v326 = vld [vmem:[%s283] sm:$0xff]
        %vm327 = vcmp.eq.s32.totalorder %v326, 0
        %v328 = vld [vmem:[%s3] sm:$0x1]
        %v329 = vld [vmem:[%s3 + $0x1] sm:$0x1]
        %v330 = vsel %vm327, 1, 0
        %331 = vset.pattern.permute.xlu0 0
        %332 = vperm.xlu0 %331, %v330
        %v333 = vpop.permute.xlu0 %332
        %vm334 = vcmp.eq.s32.totalorder %v333, 1
        %v335 = vlaneseq
        %v336 = vshrl.u32 %v335, 7
        %v337 = vsub.s32 0, %v336
        %v338 = vrot.slane %v328, %v337
        %v339 = vlaneseq
        %v340 = vshrl.u32 %v339, 7
        %v341 = vsub.s32 0, %v340
        %v342 = vrot.slane %v329, %v341
        %v343 = vsel %vm334, %v338, %v342
        %v344 = vadd.f32 %v325, %v343
        %v345 = vld [vmem:[%s4] sm:$0xff]
        %v346 = vadd.f32 %v344, %v345
        %347 = vadd.xlane.f32.xlu0 %v346
        %v348 = vpop.xlane.xlu0 %347
        %v349 = vmul.f32 %v348, 0.03125
        %v350 = vmul.f32 %v346, %v346
        %351 = vadd.xlane.f32.xlu0 %v350
        %v352 = vpop.xlane.xlu0 %351
        %v353 = vmul.f32 %v352, 0.03125
        %v354 = vmul.f32 %v349, %v349
        %v355 = vsub.f32 %v353, %v354
        %v356 = vmax.f32 %v355, 0.0
        %v357 = vsub.f32 %v346, %v349
        %v358 = vadd.f32 %v356, 1e-12
        %v359 = vrsqrt.pop %v358
        %v360 = vmul.f32 %v357, %v359
        %v361 = vpack.c.bf16 %v360, %v360
        %v362 = vld [vmem:[#allocation8] sm:$0xf]
        %v363 = vld [vmem:[#allocation8 + $0x4] sm:$0xf]
        %v364 = vld [vmem:[#allocation8 + $0x8] sm:$0xf]
        %v365 = vld [vmem:[#allocation8 + $0xc] sm:$0xf]
        %v366 = vld [vmem:[#allocation8 + $0x10] sm:$0xf]
        %v367 = vld [vmem:[#allocation8 + $0x14] sm:$0xf]
        %v368 = vld [vmem:[#allocation8 + $0x18] sm:$0xf]
        %v369 = vld [vmem:[#allocation8 + $0x1c] sm:$0xf]
        %v370 = vld [vmem:[#allocation8 + $0x20] sm:$0xf]
        %v371 = vld [vmem:[#allocation8 + $0x24] sm:$0xf]
        %v372 = vld [vmem:[#allocation8 + $0x28] sm:$0xf]
        %v373 = vld [vmem:[#allocation8 + $0x2c] sm:$0xf]
        %v374 = vld [vmem:[#allocation8 + $0x30] sm:$0xf]
        %v375 = vld [vmem:[#allocation8 + $0x34] sm:$0xf]
        %v376 = vld [vmem:[#allocation8 + $0x38] sm:$0xf]
        %v377 = vld [vmem:[#allocation8 + $0x3c] sm:$0xf]
        %v378 = vld [vmem:[%s6] sm:$0x1]
        %v380 = vlaneseq
        %v381 = vshrl.u32 %v380, 7
        %v382 = vsub.s32 0, %v381
        %v383 = vrot.slane %v378, %v382
        %v401 = vunpack.c.l.b16 %v362
        %v402 = vunpack.c.l.b16 %v363
        %v403 = vunpack.c.l.b16 %v364
        %v404 = vunpack.c.l.b16 %v365
        %v405 = vunpack.c.l.b16 %v366
        %v406 = vunpack.c.l.b16 %v367
        %v407 = vunpack.c.l.b16 %v368
        %v408 = vunpack.c.l.b16 %v369
        %v409 = vunpack.c.l.b16 %v370
        %v410 = vunpack.c.l.b16 %v371
        %v411 = vunpack.c.l.b16 %v372
        %v412 = vunpack.c.l.b16 %v373
        %v413 = vunpack.c.l.b16 %v374
        %v414 = vunpack.c.l.b16 %v375
        %v415 = vunpack.c.l.b16 %v376
        %v416 = vunpack.c.l.b16 %v377
        %v417 = vpack.c.b16 %v402, %v401
        %v418 = vpack.c.b16 %v404, %v403
        %v419 = vpack.c.b16 %v406, %v405
        %v420 = vpack.c.b16 %v408, %v407
        %v421 = vpack.c.b16 %v410, %v409
        %v422 = vpack.c.b16 %v412, %v411
        %v423 = vpack.c.b16 %v414, %v413
        %v424 = vpack.c.b16 %v416, %v415
        %433 = vmatprep.subr.bf16.mxu0 0
        %434 = vmatpush1.bf16.msra.mxu0 %v417
        %435 = vmatprep.subr.bf16.mxu0 0
        %436 = vmatpush1.bf16.msra.mxu0 %v418
        %437 = vmatprep.subr.bf16.mxu0 0
        %438 = vmatpush1.bf16.msra.mxu0 %v419
        %439 = vmatprep.subr.bf16.mxu0 0
        %440 = vmatpush1.bf16.msra.mxu0 %v420
        %441 = vmatprep.subr.bf16.mxu0 0
        %442 = vmatpush1.bf16.msra.mxu0 %v421
        %443 = vmatprep.subr.bf16.mxu0 0
        %444 = vmatpush1.bf16.msra.mxu0 %v422
        %445 = vmatprep.subr.bf16.mxu0 0
        %446 = vmatpush1.bf16.msra.mxu0 %v423
        %447 = vmatprep.subr.bf16.mxu0 0
        %448 = vmatpush1.bf16.msra.mxu0 %v424
        %449 = vmatprep.subr.bf16.mxu0 0
        %450 = vmatpush1.bf16.msra.mxu0 0
        %451 = vmatprep.subr.bf16.mxu0 0
        %452 = vmatpush1.bf16.msra.mxu0 0
        %453 = vmatprep.subr.bf16.mxu0 0
        %454 = vmatpush1.bf16.msra.mxu0 0
        %455 = vmatprep.subr.bf16.mxu0 0
        %456 = vmatpush1.bf16.msra.mxu0 0
        %457 = vmatprep.subr.bf16.mxu0 0
        %458 = vmatpush1.bf16.msra.mxu0 0
        %459 = vmatprep.subr.bf16.mxu0 0
        %460 = vmatpush1.bf16.msra.mxu0 0
        %461 = vmatprep.subr.bf16.mxu0 0
        %462 = vmatpush1.bf16.msra.mxu0 0
        %463 = vmatprep.subr.bf16.mxu0 0
        %464 = vmatpush1.bf16.msra.mxu0 0
        %465 = vmatprep.mubr.bf16.mxu0 0
        %466 = vmatmul.mubr.bf16.gmra.mrb[0].mxu0 %v361
        %v467 = vpop.f32.mrb[0].mxu0
        %v468 = vadd.f32 %v383, %v467
        %v469 = vpop.f32.mrb[0].mxu0
        %v470 = vpop.f32.mrb[0].mxu0
        %v471 = vpop.f32.mrb[0].mxu0
        %472 = vdwg.mxu0
        %473 = vst [vmem:[%s279] sm:$0xff] %v468
        %s474 = sand.u32 %s168, 1
        %s475 = scalar_lea.sflag [#allocation7], %s474
        %s476 = sand.u32 %s168, 1
        %s477 = smul.addr %s476, 8
        %s478 = scalar_lea.vmem [#allocation10], %s477
        // Predicated region
        $region53: #{tpu_custom_call.1} parent=43 // pred_check
          %p479 = pneg %p178
        $region54: #{tpu_custom_call.1} parent=43 // pred_check_branch
          %481 = sbr.rel (%p479) target = $region56
        $region55: #{tpu_custom_call.1} parent=43 // pred_region
          %s483 = ssub.s32 128, 128
          %484 = vsyncadd %s475, %s483
          %s485 = smul.addr %s29, 128
          %s486 = scalar_lea.hbm %s7, %s485
          %s488 = sshll.u32 %s478, 4
          %s489 = int_to_ptr.vmem [resolvable:$true] %s488
          %491 = dma.vmem_to_hbm [thread:$0]  %s489, 128, %s486, %s475
        $region56: #{tpu_custom_call.1} parent=43 // pred_fallthru
          _
      $region44: #{tpu_custom_call.1} parent=5 // pred_fallthru
        _
      %p492 = scmp.le.s32.totalorder 2, %s24
      // Predicated region
      $region57: #{tpu_custom_call.1} parent=5 // pred_check
        %p493 = pneg %p492
      $region58: #{tpu_custom_call.1} parent=5 // pred_check_branch
        %495 = sbr.rel (%p493) target = $region60
      $region59: #{tpu_custom_call.1} parent=5 // pred_region
        %s496 = ssub.s32 %s24, 2
        // Predicated region
        $region61: #{tpu_custom_call.1} parent=59 // pred_check
          %p497 = pneg %p184
        $region62: #{tpu_custom_call.1} parent=59 // pred_check_branch
          %499 = sbr.rel (%p497) target = $region64
        $region63: #{tpu_custom_call.1} parent=59 // pred_region
          %s500 = sand.u32 %s169, 1
          %s501 = scalar_lea.sflag [#allocation7], %s500
          %s502 = sand.u32 %s169, 1
          %s503 = smul.addr %s502, 8
          %s504 = scalar_lea.vmem [#allocation10], %s503
          %505 = dma.done %s501, 128
        $region64: #{tpu_custom_call.1} parent=59 // pred_fallthru
          _
      $region60: #{tpu_custom_call.1} parent=5 // pred_fallthru
        _
    $region6: #{tpu_custom_call.1} parent=1 // loop_footer
      %s28 = sadd.s32 1, %s24
    $region7: #{tpu_custom_call.1} parent=1 // loop_footer_branch
      %23 = sbr.rel target = $region3
    $region8: #{tpu_custom_call.1} parent=1 // loop_exit
      _
    %506 = vsyncpa [#allocation6], 1
    %s507 = scalar_lea.sflag [#allocation6], 1
    %508 = vsyncpa %s507, 1
    %509 = vsyncpa [#allocation9], 1
    %510 = vsyncpa [#allocation7], 1
    %s511 = scalar_lea.sflag [#allocation7], 1
    %512 = vsyncpa %s511, 1

</llo_original>
